<compile_context>
chip_gen: v6e
topology: v6e:2x2x1
jax: 0.10.0
libtpu: 0.0.40
codegen_flags: <defaults>
</compile_context>

<pallas_src>
import functools

import jax
import jax.numpy as jnp
from jax import lax
from jax.experimental import pallas as pl
from jax.experimental.pallas import tpu as pltpu


def _round_up(a: int, b: int) -> int:
    return (a + b - 1) // b * b


def _rmsnorm_kernel(x_ref, w_ref, o_ref, *, eps, inv_dim):
    # x_ref: (tm, dim) tile of rows, w_ref: (1, dim) weight, o_ref: (tm, dim).
    # Rows of the ragged last block beyond the logical row count contain
    # undefined data; whatever they produce (possibly NaN) is discarded by the
    # masked writeback, so no wrapper-side padding/slicing is needed.
    x32 = x_ref[...].astype(jnp.float32)                    # x.float()
    ss = jnp.sum(x32 * x32, axis=-1, keepdims=True)         # sum(x^2, -1)
    norm32 = x32 * lax.rsqrt(ss * inv_dim + eps)             # mean folded into rsqrt arg
    norm = norm32.astype(x_ref.dtype)                        # .type_as(x)
    o_ref[...] = (norm * w_ref[...]).astype(o_ref.dtype)     # * weight


def _device_params():
    """Returns (target_step_bytes, vmem_capacity_bytes, tensorcores_per_device)."""
    target_step = 16 << 20        # safe everywhere
    vmem_cap = 64 << 20           # conservative default (v7x per-TC VMEM)
    num_tc = 1
    try:
        vmem_cap = int(pltpu.get_tpu_info().vmem_capacity_bytes)
    except Exception:
        pass
    kind = ""
    try:
        kind = jax.devices()[0].device_kind.lower()
    except Exception:
        pass
    if "v7" in kind:
        target_step = 14 << 20    # 3.2 TB/s HBM: keep per-step overhead ~5%; fits 64 MiB VMEM
        num_tc = 2
    elif "v6" in kind or "v5" in kind:
        target_step = 20 << 20    # 128 MiB VMEM, slower HBM -> bigger steps are free
    elif "v4" in kind:
        target_step = 20 << 20
        num_tc = 2                # megacore
    return target_step, vmem_cap, num_tc


def rmsnorm(x, weight, eps=1e-6):
    """RMSNorm over the last axis of x. weight has shape (dim,)."""
    orig_shape = x.shape
    dim = orig_shape[-1]
    rows = 1
    for s in orig_shape[:-1]:
        rows *= s

    # Output dtype follows PyTorch promotion of (norm.type_as(x) * weight).
    out_dtype = jnp.promote_types(x.dtype, weight.dtype)
    x_bytes = jnp.dtype(x.dtype).itemsize
    o_bytes = jnp.dtype(out_dtype).itemsize
    w_bytes = jnp.dtype(weight.dtype).itemsize

    target_step_bytes, vmem_cap, num_tc = _device_params()

    # Sublane alignment for the row tile: 8 for f32, 16 for bf16, 32 for int8.
    row_align = max(8, 32 // min(x_bytes, o_bytes))

    # Per-row footprints:
    #   HBM traffic per row (in + out), and VMEM per row for one pipelined step:
    #   double-buffered in/out blocks plus ~2 f32 temporaries (x32 / norm32)
    #   that the sum-of-squares reduce forces to live in VMEM.
    step_bytes_per_row = dim * (x_bytes + o_bytes)
    vmem_bytes_per_row = dim * (2 * x_bytes + 2 * o_bytes + 2 * 4)

    # Byte-aware tile-size choice (no hard row cap): hit the per-generation
    # target step size, then clamp so everything fits in VMEM with headroom.
    vmem_budget = max(vmem_cap - (16 << 20), 16 << 20)
    tm_target = target_step_bytes // step_bytes_per_row
    tm_vmem = vmem_budget // vmem_bytes_per_row
    tm = max(row_align, (min(tm_target, tm_vmem) // row_align) * row_align)

    rows_aligned = _round_up(rows, row_align)
    if tm >= rows_aligned:
        if (num_tc >= 2 and rows_aligned >= 2 * row_align
                and rows * step_bytes_per_row >= (1 << 20)):
            # Keep >=2 grid steps only where it helps: multi-TC chips (v7x / megacore).
            tm = _round_up((rows_aligned + 1) // 2, row_align)
        else:
            tm = rows_aligned

    grid = pl.cdiv(rows, tm)

    # No padding / slicing in the wrapper (each was a full extra HBM pass):
    # the ragged last row-block is handled by Pallas, and a block last dim
    # equal to the full array dim is exempt from the 128-divisibility rule.
    x2d = x.reshape(rows, dim)
    w2d = weight.reshape(1, dim)

    # Scoped-VMEM budget: pipelined blocks + f32 temporaries + headroom,
    # never above the device's physical capacity.
    vmem_est = tm * vmem_bytes_per_row + 2 * dim * w_bytes
    vmem_limit = min(vmem_cap, max(vmem_est + (8 << 20), 32 << 20))

    kernel = functools.partial(_rmsnorm_kernel, eps=float(eps), inv_dim=1.0 / float(dim))

    cost = pl.CostEstimate(
        flops=4 * rows * dim,
        transcendentals=rows,
        bytes_accessed=rows * dim * (x_bytes + o_bytes) + dim * w_bytes,
    )

    out2d = pl.pallas_call(
        kernel,
        out_shape=jax.ShapeDtypeStruct((rows, dim), out_dtype),
        grid_spec=pltpu.PrefetchScalarGridSpec(
            num_scalar_prefetch=0,
            grid=(grid,),
            in_specs=[
                pl.BlockSpec((tm, dim), lambda i: (i, 0)),   # x rows tile
                pl.BlockSpec((1, dim), lambda i: (0, 0)),    # weight (block-resident)
            ],
            out_specs=pl.BlockSpec((tm, dim), lambda i: (i, 0)),
        ),
        compiler_params=pltpu.CompilerParams(
            dimension_semantics=("parallel",),
            vmem_limit_bytes=int(vmem_limit),
        ),
        cost_estimate=cost,
    )(x2d, w2d)

    return out2d.reshape(orig_shape)


def rmsnorm_ref(x, weight, eps=1e-6):
    x32 = x.astype(jnp.float32)
    norm = x32 * lax.rsqrt(jnp.mean(x32 * x32, axis=-1, keepdims=True) + eps)
    return norm.astype(x.dtype) * weight


if __name__ == "__main__":
    key = jax.random.PRNGKey(0)

    # Shapes implied by the module's forward: x = (..., dim), weight = (dim,)
    batch, seq, dim = 2, 8, 128
    x = jax.random.normal(key, (batch, seq, dim), dtype=jnp.float32)
    weight = jnp.ones((dim,), dtype=jnp.float32)  # RMSNorm.__init__ uses ones(dim)

    out = jax.block_until_ready(rmsnorm(x, weight, eps=1e-6))
    ref = rmsnorm_ref(x, weight, eps=1e-6)
    assert out.shape == x.shape, (out.shape, x.shape)
    assert out.dtype == ref.dtype, (out.dtype, ref.dtype)
    assert jnp.allclose(out, ref, atol=1e-5, rtol=1e-5), "mismatch vs reference"

    # Ragged path: rows not a multiple of the tile and dim not a multiple of 128
    # (handled entirely by Pallas masking -- no wrapper pad / slice).
    x2 = jax.random.normal(jax.random.PRNGKey(0), (3, 5, 96), dtype=jnp.float32)
    w2 = jnp.ones((96,), dtype=jnp.float32)
    out2 = jax.block_until_ready(rmsnorm(x2, w2, eps=1e-6))
    ref2 = rmsnorm_ref(x2, w2, eps=1e-6)
    assert out2.shape == x2.shape, (out2.shape, x2.shape)
    assert jnp.allclose(out2, ref2, atol=1e-5, rtol=1e-5), "ragged-path mismatch"

    # bf16 input with f32 weight: checks the out-dtype promotion (type_as(x) * weight).
    x3 = jax.random.normal(jax.random.PRNGKey(0), (4, 7, 192), dtype=jnp.bfloat16)
    w3 = jnp.ones((192,), dtype=jnp.float32)
    out3 = jax.block_until_ready(rmsnorm(x3, w3, eps=1e-6))
    ref3 = rmsnorm_ref(x3, w3, eps=1e-6)
    assert out3.shape == x3.shape, (out3.shape, x3.shape)
    assert out3.dtype == ref3.dtype, (out3.dtype, ref3.dtype)
    assert jnp.allclose(out3, ref3, atol=2e-2, rtol=2e-2), "bf16-path mismatch"

    print("KERNEL_OK")
</pallas_src>

<mosaic_0001>
module attributes {stable_mosaic.version = 11 : i64} {
  func.func @_rmsnorm_kernel(%arg0: i32, %arg1: memref<16x128xf32, #tpu.memory_space<vmem>>, %arg2: memref<1x128xf32, #tpu.memory_space<vmem>>, %arg3: memref<16x128xf32, #tpu.memory_space<vmem>>) attributes {dimension_semantics = [#tpu.dimension_semantics<parallel>], iteration_bounds = array<i64: 1>, scalar_prefetch = 0 : i64, scratch_operands = 0 : i64, tpu.core_type = #tpu.core_type<tc>, window_params = [{transform_indices = @transform_0, window_bounds = array<i64: 16, 128>}, {pipeline_mode = #tpu.pipeline_mode<synchronous>, transform_indices = @transform_1, window_bounds = array<i64: 1, 128>}, {transform_indices = @transform_2, window_bounds = array<i64: 16, 128>}]} {
    %c0 = arith.constant 0 : index
    %c0_0 = arith.constant 0 : index
    %0 = vector.load %arg1[%c0, %c0_0] : memref<16x128xf32, #tpu.memory_space<vmem>>, vector<16x128xf32>
    %1 = arith.mulf %0, %0 : vector<16x128xf32>
    %cst = arith.constant dense<0.000000e+00> : vector<16xf32>
    %2 = vector.multi_reduction <add>, %1, %cst [1] : vector<16x128xf32> to vector<16xf32>
    %3 = vector.shape_cast %2 : vector<16xf32> to vector<16x1xf32>
    %cst_1 = arith.constant 7.812500e-03 : f32
    %4 = vector.broadcast %cst_1 : f32 to vector<16x1xf32>
    %5 = arith.mulf %3, %4 : vector<16x1xf32>
    %cst_2 = arith.constant 9.99999997E-7 : f32
    %6 = vector.broadcast %cst_2 : f32 to vector<16x1xf32>
    %7 = arith.addf %5, %6 : vector<16x1xf32>
    %8 = math.rsqrt %7 : vector<16x1xf32>
    %9 = vector.broadcast %8 : vector<16x1xf32> to vector<16x128xf32>
    %10 = arith.mulf %0, %9 : vector<16x128xf32>
    %c0_3 = arith.constant 0 : index
    %c0_4 = arith.constant 0 : index
    %11 = vector.load %arg2[%c0_3, %c0_4] : memref<1x128xf32, #tpu.memory_space<vmem>>, vector<1x128xf32>
    %12 = vector.broadcast %11 : vector<1x128xf32> to vector<16x128xf32>
    %13 = arith.mulf %10, %12 : vector<16x128xf32>
    %c0_5 = arith.constant 0 : index
    %c0_6 = arith.constant 0 : index
    %14 = vector.load %arg3[%c0_5, %c0_6] : memref<16x128xf32, #tpu.memory_space<vmem>>, vector<16x128xf32>
    tpu.vector_store %arg3[%c0_5, %c0_6], %13 {strides = array<i32>} : memref<16x128xf32, #tpu.memory_space<vmem>>, vector<16x128xf32>,
    return
  }
  func.func @transform_0(%arg0: i32) -> (i32, i32) {
    %c0_i32 = arith.constant 0 : i32
    %c0_i32_0 = arith.constant 0 : i32
    return %arg0, %c0_i32 : i32, i32
  }
  func.func @transform_1(%arg0: i32) -> (i32, i32) {
    %c0_i32 = arith.constant 0 : i32
    %c0_i32_0 = arith.constant 0 : i32
    %c0_i32_1 = arith.constant 0 : i32
    return %c0_i32, %c0_i32_0 : i32, i32
  }
  func.func @transform_2(%arg0: i32) -> (i32, i32) {
    %c0_i32 = arith.constant 0 : i32
    %c0_i32_0 = arith.constant 0 : i32
    return %arg0, %c0_i32 : i32, i32
  }
}

</mosaic_0001>

<llo_original>
// kernel: tpu_custom_call.1
$region0: #{tpu_custom_call.1}
  #allocation0 [shape = 'u32[]', space=smem, size = 0x4, offset = 0x4, fixed_abs, tag = 'smem constant byte address 0x4 - core index']
  #allocation1 [shape = 'u32[144,128]{1,0:T(1,128)}', space=vmem, size = 0x12000, scoped, tag = 'internal scratch']
  %s0 = inlined_call_operand.hbm [shape: f32[16,128], index: 0, kind: input, shape index: {}]
  %s1 = inlined_call_operand.vmem [shape: f32[1,128], index: 1, kind: input, shape index: {}]
  %s2 = inlined_call_operand.hbm [shape: f32[16,128], index: 2, kind: output, shape index: {}]
  %s3 = sld [smem:[#allocation0]]
  $region22: #{tpu_custom_call.1} parent=0
    _
  %s5 = ssub.s32 1, %s3
  %s6 = scalar_select 0, %s5, %s3
  $region1: #{tpu_custom_call.1} parent=0
    #allocation2 [shape = 'u8[8192]{0}', space=vmem, size = 0x2000, scoped, tag = 'input window, operand 0, single buffered']
    #allocation3 [shape = 's32[1]{0}', space=sflag, size = 0x4, scoped, tag = 'scoped memory for tpu_custom_call.1']
    #allocation4 [shape = 's32[1]{0}', space=sflag, size = 0x4, scoped, tag = 'scoped memory for tpu_custom_call.1']
    #allocation5 [shape = 'u8[8192]{0}', space=vmem, size = 0x2000, scoped, tag = 'output window, operand 0, single buffered']
    %7 = vsyncpa [#allocation3], 0
    %8 = vsyncpa [#allocation4], 0
    // Predicated region
    $region2: #{tpu_custom_call.1} parent=1 // pred_check
      _
    $region3: #{tpu_custom_call.1} parent=1 // pred_check_branch
      %10 = sbr.rel (0) target = $region5
    $region4: #{tpu_custom_call.1} parent=1 // pred_region
      %s12 = ssub.s32 256, 256
      %13 = vsyncadd [#allocation3], %s12
      %s14 = sshll.u32 [#allocation2], 4
      %s15 = int_to_ptr.vmem [resolvable:$true] %s14
      %20 = dma.hbm_to_vmem [thread:$0]  %s0, 256, %s15, [#allocation3], 128, 128, 8
    $region5: #{tpu_custom_call.1} parent=1 // pred_fallthru
      _
    // Predicated region
    $region6: #{tpu_custom_call.1} parent=1 // pred_check
      _
    $region7: #{tpu_custom_call.1} parent=1 // pred_check_branch
      %22 = sbr.rel (0) target = $region9
    $region8: #{tpu_custom_call.1} parent=1 // pred_region
      _
    $region9: #{tpu_custom_call.1} parent=1 // pred_fallthru
      _
    // Predicated region
    $region10: #{tpu_custom_call.1} parent=1 // pred_check
      _
    $region11: #{tpu_custom_call.1} parent=1 // pred_check_branch
      %24 = sbr.rel (0) target = $region13
    $region12: #{tpu_custom_call.1} parent=1 // pred_region
      %25 = dma.done [#allocation3], 256
    $region13: #{tpu_custom_call.1} parent=1 // pred_fallthru
      _
    %v26 = vld [vmem:[#allocation2] sm:$0xff]
    %v27 = vld [vmem:[#allocation2 + $0x8] sm:$0xff]
    %v28 = vmul.f32 %v26, %v26
    %v29 = vmul.f32 %v27, %v27
    %30 = vadd.xlane.f32.xlu0 %v28
    %v31 = vpop.xlane.xlu0 %30
    %32 = vadd.xlane.f32.xlu0 %v29
    %v33 = vpop.xlane.xlu0 %32
    %v34 = vmul.f32 %v31, 0.0078125
    %v35 = vmul.f32 %v33, 0.0078125
    %v36 = vadd.f32 %v34, 1e-06
    %v37 = vadd.f32 %v35, 1e-06
    %v38 = vrsqrt.pop %v36
    %v39 = vrsqrt.pop %v37
    %v40 = vmul.f32 %v26, %v38
    %v41 = vmul.f32 %v27, %v39
    %v42 = vld [vmem:[%s1] sm:$0x1]
    %v44 = vlaneseq
    %v45 = vshrl.u32 %v44, 7
    %v46 = vsub.s32 0, %v45
    %v47 = vrot.slane %v42, %v46
    %v49 = vmul.f32 %v40, %v47
    %v50 = vmul.f32 %v41, %v47
    %51 = vst [vmem:[#allocation5] sm:$0xff] %v49
    %52 = vst [vmem:[#allocation5 + $0x8] sm:$0xff] %v50
    // Predicated region
    $region14: #{tpu_custom_call.1} parent=1 // pred_check
      _
    $region15: #{tpu_custom_call.1} parent=1 // pred_check_branch
      %54 = sbr.rel (0) target = $region17
    $region16: #{tpu_custom_call.1} parent=1 // pred_region
      %s56 = ssub.s32 256, 256
      %57 = vsyncadd [#allocation4], %s56
      %s58 = sshll.u32 [#allocation5], 4
      %s59 = int_to_ptr.vmem [resolvable:$true] %s58
      %64 = dma.vmem_to_hbm [thread:$0]  %s59, 256, %s2, [#allocation4], 128, 128, 8
    $region17: #{tpu_custom_call.1} parent=1 // pred_fallthru
      _
    // Predicated region
    $region18: #{tpu_custom_call.1} parent=1 // pred_check
      _
    $region19: #{tpu_custom_call.1} parent=1 // pred_check_branch
      %66 = sbr.rel (0) target = $region21
    $region20: #{tpu_custom_call.1} parent=1 // pred_region
      %67 = dma.done [#allocation4], 256
    $region21: #{tpu_custom_call.1} parent=1 // pred_fallthru
      _
    %68 = vsyncpa [#allocation3], 1
    %69 = vsyncpa [#allocation4], 1

</llo_original>
